<compile_context>
chip_gen: v7x
topology: tpu7x:2x2x1
jax: 0.10.0
libtpu: 0.0.40
codegen_flags: <defaults>
</compile_context>

<pallas_src>
import jax
import jax.numpy as jnp
from jax.experimental import pallas as pl
from jax.experimental.pallas import tpu as pltpu

LATENT_DIM = 32
H1 = 40
H2 = 80
OUT = 1
LANE = 128          # lane width: pad hidden feature dims of the MLP to this
NEG_SLOPE = 0.2


def _round_up(n, m):
    return ((n + m - 1) // m) * m


def _disc_kernel(x_ref, w1_ref, b1_ref, w2_ref, b2_ref, w3_ref, b3_ref, o_ref):
    x = x_ref[...]                                   # (TB, LATENT_DIM) f32

    # lin1 + (dropout == identity in eval) + LeakyReLU(0.2)
    h1 = jnp.dot(x, w1_ref[...], preferred_element_type=jnp.float32) + b1_ref[...]
    h1 = jnp.maximum(h1, NEG_SLOPE * h1)             # padded lanes are 0 -> stay 0

    # lin2 + (dropout == identity in eval) + LeakyReLU(0.2)
    h2 = jnp.dot(h1, w2_ref[...], preferred_element_type=jnp.float32) + b2_ref[...]
    h2 = jnp.maximum(h2, NEG_SLOPE * h2)

    # lin3 + Identity: output width is 1, so use VPU mul + XLU lane-reduce
    # (padded lanes contribute 0) and emit the (TB, 1) logit directly.
    o = jnp.sum(h2 * w3_ref[...], axis=-1, keepdims=True) + b3_ref[...]
    o_ref[...] = o.astype(o_ref.dtype)
    # TODO(synk): training-mode Dropout2d would need pltpu.prng_random_bits; omitted (eval semantics).


def discriminator_forward(x, padded_params, *, block_b=1024):
    """x: (B, LATENT_DIM) f32. padded_params: lane-padded weights from pad_params()."""
    w1, b1, w2, b2, w3, b3 = padded_params
    B = x.shape[0]

    # Batch tile: multiple of 8 (sublane), capped at block_b. Pad B up to a TB
    # multiple so the grid has no ragged tail tile.
    TB = min(block_b, _round_up(max(B, 1), 8))
    Bp = _round_up(B, TB)
    if Bp != B:
        x = jnp.pad(x, ((0, Bp - B), (0, 0)))
    grid = (Bp // TB,)

    out_pad = pl.pallas_call(
        _disc_kernel,
        out_shape=jax.ShapeDtypeStruct((Bp, OUT), jnp.float32),
        grid=grid,
        in_specs=[
            # x: new tile each grid step (double-buffered by the pipeline)
            pl.BlockSpec((TB, LATENT_DIM), lambda i: (i, 0)),
            # weights/biases: constant block index -> stay resident in VMEM
            pl.BlockSpec((LATENT_DIM, LANE), lambda i: (0, 0)),
            pl.BlockSpec((1, LANE), lambda i: (0, 0)),
            pl.BlockSpec((LANE, LANE), lambda i: (0, 0)),
            pl.BlockSpec((1, LANE), lambda i: (0, 0)),
            pl.BlockSpec((1, LANE), lambda i: (0, 0)),   # w3 stored as a row
            pl.BlockSpec((1, 1), lambda i: (0, 0)),      # b3 scalar
        ],
        out_specs=pl.BlockSpec((TB, OUT), lambda i: (i, 0)),
        compiler_params=pltpu.CompilerParams(
            dimension_semantics=("parallel",)),   # lights up 2nd TC on v7x
    )(x, w1, b1, w2, b2, w3, b3)

    out = out_pad if Bp == B else out_pad[:B]
    # PyTorch module returns (output, x) where both are the final activation.
    return out, out


def init_params(key):
    """Real-shape params, mimicking nn.Linear default init:
    U(-1/sqrt(fan_in), +1/sqrt(fan_in)). Weights stored as [in, out]."""
    ks = jax.random.split(key, 6)

    def lin(kw, kb, fan_in, fan_out):
        bound = 1.0 / (fan_in ** 0.5)
        w = jax.random.uniform(kw, (fan_in, fan_out), jnp.float32, -bound, bound)
        b = jax.random.uniform(kb, (1, fan_out), jnp.float32, -bound, bound)
        return w, b

    w1, b1 = lin(ks[0], ks[1], LATENT_DIM, H1)
    w2, b2 = lin(ks[2], ks[3], H1, H2)
    w3, b3 = lin(ks[4], ks[5], H2, OUT)
    return (w1, b1, w2, b2, w3, b3)


def pad_params(params):
    """Zero-pad every hidden feature dim to the 128-lane width. Zeros pass
    through bias-add and LeakyReLU unchanged, so numerics in the real columns
    are identical to the unpadded computation. The final (80 -> 1) weight is
    stored as a single lane-padded row for the in-kernel lane reduction."""
    w1, b1, w2, b2, w3, b3 = params
    w1p = jnp.zeros((LATENT_DIM, LANE), jnp.float32).at[:, :H1].set(w1)
    b1p = jnp.zeros((1, LANE), jnp.float32).at[:, :H1].set(b1)
    w2p = jnp.zeros((LANE, LANE), jnp.float32).at[:H1, :H2].set(w2)
    b2p = jnp.zeros((1, LANE), jnp.float32).at[:, :H2].set(b2)
    w3p = jnp.zeros((1, LANE), jnp.float32).at[:, :H2].set(w3[:, 0])
    b3p = b3.reshape(1, 1).astype(jnp.float32)
    return (w1p, b1p, w2p, b2p, w3p, b3p)


def _reference(x, raw_params):
    w1, b1, w2, b2, w3, b3 = raw_params
    h = x @ w1 + b1
    h = jnp.where(h > 0, h, NEG_SLOPE * h)
    h = h @ w2 + b2
    h = jnp.where(h > 0, h, NEG_SLOPE * h)
    return h @ w3 + b3


if __name__ == "__main__":
    key = jax.random.PRNGKey(0)
    k_param, k_x1, k_x2 = jax.random.split(key, 3)

    raw_params = init_params(k_param)
    padded_params = pad_params(raw_params)

    # Small primary case.
    B = 8
    x = jax.random.normal(k_x1, (B, LATENT_DIM), dtype=jnp.float32)
    output, x_out = discriminator_forward(x, padded_params)
    output = jax.block_until_ready(output)
    x_out = jax.block_until_ready(x_out)

    ref = _reference(x, raw_params)
    assert output.shape == (B, OUT)
    assert x_out.shape == (B, OUT)
    assert jnp.allclose(output, ref, atol=1e-5, rtol=1e-5)
    assert jnp.allclose(x_out, ref, atol=1e-5, rtol=1e-5)

    # Multi-tile + ragged-batch case (exercises grid pipelining and padding).
    B2 = 300
    x2 = jax.random.normal(k_x2, (B2, LATENT_DIM), dtype=jnp.float32)
    out2, _ = discriminator_forward(x2, padded_params, block_b=128)
    out2 = jax.block_until_ready(out2)
    ref2 = _reference(x2, raw_params)
    assert out2.shape == (B2, OUT)
    assert jnp.allclose(out2, ref2, atol=1e-5, rtol=1e-5)

    print("KERNEL_OK")
</pallas_src>

<mosaic_0001>
module attributes {stable_mosaic.version = 11 : i64} {
  func.func @_disc_kernel(%arg0: i32, %arg1: memref<8x32xf32, #tpu.memory_space<vmem>>, %arg2: memref<32x128xf32, #tpu.memory_space<vmem>>, %arg3: memref<1x128xf32, #tpu.memory_space<vmem>>, %arg4: memref<128x128xf32, #tpu.memory_space<vmem>>, %arg5: memref<1x128xf32, #tpu.memory_space<vmem>>, %arg6: memref<1x128xf32, #tpu.memory_space<vmem>>, %arg7: memref<1x1xf32, #tpu.memory_space<vmem>>, %arg8: memref<8x1xf32, #tpu.memory_space<vmem>>) attributes {dimension_semantics = [#tpu.dimension_semantics<parallel>], iteration_bounds = array<i64: 1>, scalar_prefetch = 0 : i64, scratch_operands = 0 : i64, tpu.core_type = #tpu.core_type<tc>, window_params = [{transform_indices = @transform_0, window_bounds = array<i64: 8, 32>}, {pipeline_mode = #tpu.pipeline_mode<synchronous>, transform_indices = @transform_1, window_bounds = array<i64: 32, 128>}, {pipeline_mode = #tpu.pipeline_mode<synchronous>, transform_indices = @transform_2, window_bounds = array<i64: 1, 128>}, {pipeline_mode = #tpu.pipeline_mode<synchronous>, transform_indices = @transform_3, window_bounds = array<i64: 128, 128>}, {pipeline_mode = #tpu.pipeline_mode<synchronous>, transform_indices = @transform_4, window_bounds = array<i64: 1, 128>}, {pipeline_mode = #tpu.pipeline_mode<synchronous>, transform_indices = @transform_5, window_bounds = array<i64: 1, 128>}, {pipeline_mode = #tpu.pipeline_mode<synchronous>, transform_indices = @transform_6, window_bounds = array<i64: 1, 1>}, {transform_indices = @transform_7, window_bounds = array<i64: 8, 1>}]} {
    %c0 = arith.constant 0 : index
    %c0_0 = arith.constant 0 : index
    %0 = vector.load %arg1[%c0, %c0_0] : memref<8x32xf32, #tpu.memory_space<vmem>>, vector<8x32xf32>
    %c0_1 = arith.constant 0 : index
    %c0_2 = arith.constant 0 : index
    %1 = vector.load %arg2[%c0_1, %c0_2] : memref<32x128xf32, #tpu.memory_space<vmem>>, vector<32x128xf32>
    %cst = arith.constant dense<0.000000e+00> : vector<8x128xf32>
    %2 = tpu.matmul %0, %1, %cst {dimension_numbers = #tpu.dot_dimension_numbers<[1], [0], [0], [1], [0, 0, 1, 1], [], []>} : vector<8x32xf32>, vector<32x128xf32>, vector<8x128xf32> -> vector<8x128xf32>
    %c0_3 = arith.constant 0 : index
    %c0_4 = arith.constant 0 : index
    %3 = vector.load %arg3[%c0_3, %c0_4] : memref<1x128xf32, #tpu.memory_space<vmem>>, vector<1x128xf32>
    %4 = vector.broadcast %3 : vector<1x128xf32> to vector<8x128xf32>
    %5 = arith.addf %2, %4 : vector<8x128xf32>
    %cst_5 = arith.constant 2.000000e-01 : f32
    %6 = vector.broadcast %cst_5 : f32 to vector<8x128xf32>
    %7 = arith.mulf %6, %5 : vector<8x128xf32>
    %8 = arith.maximumf %5, %7 : vector<8x128xf32>
    %c0_6 = arith.constant 0 : index
    %c0_7 = arith.constant 0 : index
    %9 = vector.load %arg4[%c0_6, %c0_7] : memref<128x128xf32, #tpu.memory_space<vmem>>, vector<128x128xf32>
    %cst_8 = arith.constant dense<0.000000e+00> : vector<8x128xf32>
    %10 = tpu.matmul %8, %9, %cst_8 {dimension_numbers = #tpu.dot_dimension_numbers<[1], [0], [0], [1], [0, 0, 1, 1], [], []>} : vector<8x128xf32>, vector<128x128xf32>, vector<8x128xf32> -> vector<8x128xf32>
    %c0_9 = arith.constant 0 : index
    %c0_10 = arith.constant 0 : index
    %11 = vector.load %arg5[%c0_9, %c0_10] : memref<1x128xf32, #tpu.memory_space<vmem>>, vector<1x128xf32>
    %12 = vector.broadcast %11 : vector<1x128xf32> to vector<8x128xf32>
    %13 = arith.addf %10, %12 : vector<8x128xf32>
    %cst_11 = arith.constant 2.000000e-01 : f32
    %14 = vector.broadcast %cst_11 : f32 to vector<8x128xf32>
    %15 = arith.mulf %14, %13 : vector<8x128xf32>
    %16 = arith.maximumf %13, %15 : vector<8x128xf32>
    %c0_12 = arith.constant 0 : index
    %c0_13 = arith.constant 0 : index
    %17 = vector.load %arg6[%c0_12, %c0_13] : memref<1x128xf32, #tpu.memory_space<vmem>>, vector<1x128xf32>
    %18 = vector.broadcast %17 : vector<1x128xf32> to vector<8x128xf32>
    %19 = arith.mulf %16, %18 : vector<8x128xf32>
    %cst_14 = arith.constant dense<0.000000e+00> : vector<8xf32>
    %20 = vector.multi_reduction <add>, %19, %cst_14 [1] : vector<8x128xf32> to vector<8xf32>
    %21 = vector.shape_cast %20 : vector<8xf32> to vector<8x1xf32>
    %c0_15 = arith.constant 0 : index
    %c0_16 = arith.constant 0 : index
    %22 = vector.load %arg7[%c0_15, %c0_16] : memref<1x1xf32, #tpu.memory_space<vmem>>, vector<1x1xf32>
    %23 = vector.broadcast %22 : vector<1x1xf32> to vector<8x1xf32>
    %24 = arith.addf %21, %23 : vector<8x1xf32>
    %c0_17 = arith.constant 0 : index
    %c0_18 = arith.constant 0 : index
    %25 = vector.load %arg8[%c0_17, %c0_18] : memref<8x1xf32, #tpu.memory_space<vmem>>, vector<8x1xf32>
    tpu.vector_store %arg8[%c0_17, %c0_18], %24 {strides = array<i32>} : memref<8x1xf32, #tpu.memory_space<vmem>>, vector<8x1xf32>,
    return
  }
  func.func @transform_0(%arg0: i32) -> (i32, i32) {
    %c0_i32 = arith.constant 0 : i32
    %c0_i32_0 = arith.constant 0 : i32
    return %arg0, %c0_i32 : i32, i32
  }
  func.func @transform_1(%arg0: i32) -> (i32, i32) {
    %c0_i32 = arith.constant 0 : i32
    %c0_i32_0 = arith.constant 0 : i32
    %c0_i32_1 = arith.constant 0 : i32
    return %c0_i32, %c0_i32_0 : i32, i32
  }
  func.func @transform_2(%arg0: i32) -> (i32, i32) {
    %c0_i32 = arith.constant 0 : i32
    %c0_i32_0 = arith.constant 0 : i32
    %c0_i32_1 = arith.constant 0 : i32
    return %c0_i32, %c0_i32_0 : i32, i32
  }
  func.func @transform_3(%arg0: i32) -> (i32, i32) {
    %c0_i32 = arith.constant 0 : i32
    %c0_i32_0 = arith.constant 0 : i32
    %c0_i32_1 = arith.constant 0 : i32
    return %c0_i32, %c0_i32_0 : i32, i32
  }
  func.func @transform_4(%arg0: i32) -> (i32, i32) {
    %c0_i32 = arith.constant 0 : i32
    %c0_i32_0 = arith.constant 0 : i32
    %c0_i32_1 = arith.constant 0 : i32
    return %c0_i32, %c0_i32_0 : i32, i32
  }
  func.func @transform_5(%arg0: i32) -> (i32, i32) {
    %c0_i32 = arith.constant 0 : i32
    %c0_i32_0 = arith.constant 0 : i32
    %c0_i32_1 = arith.constant 0 : i32
    return %c0_i32, %c0_i32_0 : i32, i32
  }
  func.func @transform_6(%arg0: i32) -> (i32, i32) {
    %c0_i32 = arith.constant 0 : i32
    %c0_i32_0 = arith.constant 0 : i32
    %c0_i32_1 = arith.constant 0 : i32
    return %c0_i32, %c0_i32_0 : i32, i32
  }
  func.func @transform_7(%arg0: i32) -> (i32, i32) {
    %c0_i32 = arith.constant 0 : i32
    %c0_i32_0 = arith.constant 0 : i32
    return %arg0, %c0_i32 : i32, i32
  }
}

</mosaic_0001>

<llo_original>
// kernel: tpu_custom_call.1
$region0: #{tpu_custom_call.1}
  #allocation0 [shape = 'u32[]', space=smem, size = 0x4, offset = 0x4, fixed_abs, tag = 'smem constant byte address 0x4 - core index']
  #allocation1 [shape = 'u32[144,128]{1,0:T(1,128)}', space=vmem, size = 0x12000, scoped, tag = 'internal scratch']
  #allocation2 [shape = 'f32[1,1]{1,0:T(1,128)S(1)}', space=vmem, size = 0x200, scoped, tag = 'scoped memory for tpu_custom_call.1']
  %s0 = inlined_call_operand.hbm [shape: f32[8,32], index: 0, kind: input, shape index: {}]
  %s1 = inlined_call_operand.hbm [shape: f32[32,128], index: 1, kind: input, shape index: {}]
  %s2 = inlined_call_operand.vmem [shape: f32[1,128], index: 2, kind: input, shape index: {}]
  %s3 = inlined_call_operand.hbm [shape: f32[128,128], index: 3, kind: input, shape index: {}]
  %s4 = inlined_call_operand.vmem [shape: f32[1,128], index: 4, kind: input, shape index: {}]
  %s5 = inlined_call_operand.vmem [shape: f32[1,128], index: 5, kind: input, shape index: {}]
  %s6 = inlined_call_operand.<no memory space> [shape: f32[1,1], index: 6, kind: input, shape index: {}]
  %s7 = inlined_call_operand.vmem [shape: f32[8,1], index: 7, kind: output, shape index: {}]
  %s8 = sld [smem:[#allocation0]]
  $region50: #{tpu_custom_call.1} parent=0
    _
  %s10 = ssub.s32 1, %s8
  %s11 = scalar_select 0, %s10, %s8
  %v12 = vstv %s6
  %13 = vst [vmem:[#allocation2] sm:$0x1] %v12
  $region1: #{tpu_custom_call.1} parent=0
    #allocation3 [shape = 'u8[4096]{0}', space=vmem, size = 0x1000, scoped, tag = 'input window, operand 0, single buffered']
    #allocation4 [shape = 's32[1]{0}', space=sflag, size = 0x4, scoped, tag = 'scoped memory for tpu_custom_call.1']
    #allocation5 [shape = 'u8[16384]{0}', space=vmem, size = 0x4000, scoped, tag = 'input window, operand 1, single buffered']
    #allocation6 [shape = 's32[1]{0}', space=sflag, size = 0x4, scoped, tag = 'scoped memory for tpu_custom_call.1']
    #allocation7 [shape = 'u8[65536]{0}', space=vmem, size = 0x10000, scoped, tag = 'input window, operand 3, single buffered']
    %14 = vsyncpa [#allocation4], 0
    %15 = vsyncpa [#allocation6], 0
    // Predicated region
    $region2: #{tpu_custom_call.1} parent=1 // pred_check
      _
    $region3: #{tpu_custom_call.1} parent=1 // pred_check_branch
      %17 = sbr.rel (0) target = $region5
    $region4: #{tpu_custom_call.1} parent=1 // pred_region
      %s19 = ssub.s32 128, 128
      %20 = vsyncadd [#allocation4], %s19
      %s22 = sshll.u32 [#allocation3], 4
      %s23 = int_to_ptr.vmem [resolvable:$true] %s22
      %25 = dma.hbm_to_vmem [thread:$0]  %s0, 128, %s23, [#allocation4]
    $region5: #{tpu_custom_call.1} parent=1 // pred_fallthru
      _
    // Predicated region
    $region6: #{tpu_custom_call.1} parent=1 // pred_check
      _
    $region7: #{tpu_custom_call.1} parent=1 // pred_check_branch
      %27 = sbr.rel (0) target = $region9
    $region8: #{tpu_custom_call.1} parent=1 // pred_region
      %s29 = ssub.s32 512, 512
      %30 = vsyncadd [#allocation6], %s29
      %s31 = sshll.u32 [#allocation5], 4
      %s32 = int_to_ptr.vmem [resolvable:$true] %s31
      %37 = dma.hbm_to_vmem [thread:$0]  %s1, 512, %s32, [#allocation6], 128, 128, 8
    $region9: #{tpu_custom_call.1} parent=1 // pred_fallthru
      _
    // Predicated region
    $region10: #{tpu_custom_call.1} parent=1 // pred_check
      _
    $region11: #{tpu_custom_call.1} parent=1 // pred_check_branch
      %39 = sbr.rel (0) target = $region13
    $region12: #{tpu_custom_call.1} parent=1 // pred_region
      _
    $region13: #{tpu_custom_call.1} parent=1 // pred_fallthru
      _
    // Predicated region
    $region14: #{tpu_custom_call.1} parent=1 // pred_check
      _
    $region15: #{tpu_custom_call.1} parent=1 // pred_check_branch
      %41 = sbr.rel (0) target = $region17
    $region16: #{tpu_custom_call.1} parent=1 // pred_region
      %s43 = ssub.s32 2048, 2048
      %44 = vsyncadd [#allocation6], %s43
      %s45 = sshll.u32 [#allocation7], 4
      %s46 = int_to_ptr.vmem [resolvable:$true] %s45
      %51 = dma.hbm_to_vmem [thread:$0]  %s3, 2048, %s46, [#allocation6], 128, 128, 8
    $region17: #{tpu_custom_call.1} parent=1 // pred_fallthru
      _
    // Predicated region
    $region18: #{tpu_custom_call.1} parent=1 // pred_check
      _
    $region19: #{tpu_custom_call.1} parent=1 // pred_check_branch
      %53 = sbr.rel (0) target = $region21
    $region20: #{tpu_custom_call.1} parent=1 // pred_region
      _
    $region21: #{tpu_custom_call.1} parent=1 // pred_fallthru
      _
    // Predicated region
    $region22: #{tpu_custom_call.1} parent=1 // pred_check
      _
    $region23: #{tpu_custom_call.1} parent=1 // pred_check_branch
      %55 = sbr.rel (0) target = $region25
    $region24: #{tpu_custom_call.1} parent=1 // pred_region
      _
    $region25: #{tpu_custom_call.1} parent=1 // pred_fallthru
      _
    // Predicated region
    $region26: #{tpu_custom_call.1} parent=1 // pred_check
      _
    $region27: #{tpu_custom_call.1} parent=1 // pred_check_branch
      %57 = sbr.rel (0) target = $region29
    $region28: #{tpu_custom_call.1} parent=1 // pred_region
      _
    $region29: #{tpu_custom_call.1} parent=1 // pred_fallthru
      _
    // Predicated region
    $region30: #{tpu_custom_call.1} parent=1 // pred_check
      _
    $region31: #{tpu_custom_call.1} parent=1 // pred_check_branch
      %59 = sbr.rel (0) target = $region33
    $region32: #{tpu_custom_call.1} parent=1 // pred_region
      %60 = dma.done [#allocation4], 128
    $region33: #{tpu_custom_call.1} parent=1 // pred_fallthru
      _
    // Predicated region
    $region34: #{tpu_custom_call.1} parent=1 // pred_check
      _
    $region35: #{tpu_custom_call.1} parent=1 // pred_check_branch
      %62 = sbr.rel (0) target = $region37
    $region36: #{tpu_custom_call.1} parent=1 // pred_region
      %63 = dma.done [#allocation6], 512
    $region37: #{tpu_custom_call.1} parent=1 // pred_fallthru
      _
    // Predicated region
    $region38: #{tpu_custom_call.1} parent=1 // pred_check
      _
    $region39: #{tpu_custom_call.1} parent=1 // pred_check_branch
      %65 = sbr.rel (0) target = $region41
    $region40: #{tpu_custom_call.1} parent=1 // pred_region
      %66 = dma.done [#allocation6], 2048
    $region41: #{tpu_custom_call.1} parent=1 // pred_fallthru
      _
    %v67 = vld [vmem:[#allocation3] sm:$0xff]
    %v68 = vld [vmem:[#allocation5] sm:$0xff]
    %v69 = vld [vmem:[#allocation5 + $0x8] sm:$0xff]
    %v70 = vld [vmem:[#allocation5 + $0x10] sm:$0xff]
    %v71 = vld [vmem:[#allocation5 + $0x18] sm:$0xff]
    %v72 = vld [vmem:[%s2] sm:$0x1]
    %v74 = vlaneseq
    %v75 = vshrl.u32 %v74, 7
    %v76 = vsub.s32 0, %v75
    %v77 = vrot.slane %v72, %v76
    %vm79 = vcmask 261120
    %v81 = vsel %vm79, %v67, 0
    %83 = vmatprep.subr.mxu0 0.0
    %84 = vmatpush1.msra.mxu0 %v68
    %85 = vmatprep.subr.mxu0 0.0
    %86 = vmatpush1.msra.mxu0 %v69
    %87 = vmatprep.subr.mxu0 0.0
    %88 = vmatpush1.msra.mxu0 %v70
    %89 = vmatprep.subr.mxu0 0.0
    %90 = vmatpush1.msra.mxu0 %v71
    %91 = vmatprep.subr.mxu0 0.0
    %92 = vmatpush1.msra.mxu0 0.0
    %93 = vmatprep.subr.mxu0 0.0
    %94 = vmatpush1.msra.mxu0 0.0
    %95 = vmatprep.subr.mxu0 0.0
    %96 = vmatpush1.msra.mxu0 0.0
    %97 = vmatprep.subr.mxu0 0.0
    %98 = vmatpush1.msra.mxu0 0.0
    %99 = vmatprep.subr.mxu0 0.0
    %100 = vmatpush1.msra.mxu0 0.0
    %101 = vmatprep.subr.mxu0 0.0
    %102 = vmatpush1.msra.mxu0 0.0
    %103 = vmatprep.subr.mxu0 0.0
    %104 = vmatpush1.msra.mxu0 0.0
    %105 = vmatprep.subr.mxu0 0.0
    %106 = vmatpush1.msra.mxu0 0.0
    %107 = vmatprep.subr.mxu0 0.0
    %108 = vmatpush1.msra.mxu0 0.0
    %109 = vmatprep.subr.mxu0 0.0
    %110 = vmatpush1.msra.mxu0 0.0
    %111 = vmatprep.subr.mxu0 0.0
    %112 = vmatpush1.msra.mxu0 0.0
    %113 = vmatprep.subr.mxu0 0.0
    %114 = vmatpush1.msra.mxu0 0.0
    %115 = vmatprep.subr.mxu0 0.0
    %116 = vmatpush1.msra.mxu0 0.0
    %117 = vmatprep.subr.mxu0 0.0
    %118 = vmatpush1.msra.mxu0 0.0
    %119 = vmatprep.subr.mxu0 0.0
    %120 = vmatpush1.msra.mxu0 0.0
    %121 = vmatprep.subr.mxu0 0.0
    %122 = vmatpush1.msra.mxu0 0.0
    %123 = vmatprep.subr.mxu0 0.0
    %124 = vmatpush1.msra.mxu0 0.0
    %125 = vmatprep.subr.mxu0 0.0
    %126 = vmatpush1.msra.mxu0 0.0
    %127 = vmatprep.subr.mxu0 0.0
    %128 = vmatpush1.msra.mxu0 0.0
    %129 = vmatprep.subr.mxu0 0.0
    %130 = vmatpush1.msra.mxu0 0.0
    %131 = vmatprep.subr.mxu0 0.0
    %132 = vmatpush1.msra.mxu0 0.0
    %133 = vmatprep.subr.mxu0 0.0
    %134 = vmatpush1.msra.mxu0 0.0
    %135 = vmatprep.subr.mxu0 0.0
    %136 = vmatpush1.msra.mxu0 0.0
    %137 = vmatprep.subr.mxu0 0.0
    %138 = vmatpush1.msra.mxu0 0.0
    %139 = vmatprep.subr.mxu0 0.0
    %140 = vmatpush1.msra.mxu0 0.0
    %141 = vmatprep.subr.mxu0 0.0
    %142 = vmatpush1.msra.mxu0 0.0
    %143 = vmatprep.subr.mxu0 0.0
    %144 = vmatpush1.msra.mxu0 0.0
    %145 = vmatprep.subr.mxu0 0.0
    %146 = vmatpush1.msra.mxu0 0.0
    %147 = vmatprep.mubr.f32.mxu0 0.0
    %148 = vmatmul.mubr.f32.gmra.mrb[0].mxu0 %v81
    %v149 = vpop.f32.mrb[0].mxu0
    %v150 = vadd.f32 %v77, %v149
    %v151 = vpop.f32.mrb[0].mxu0
    %152 = vdwg.mxu0
    %v153 = vmul.f32 %v150, 0.2
    %v154 = vmax.f32 %v150, %v153
    %v155 = vld [vmem:[#allocation7] sm:$0xff]
    %v156 = vld [vmem:[#allocation7 + $0x8] sm:$0xff]
    %v157 = vld [vmem:[#allocation7 + $0x10] sm:$0xff]
    %v158 = vld [vmem:[#allocation7 + $0x18] sm:$0xff]
    %v159 = vld [vmem:[#allocation7 + $0x20] sm:$0xff]
    %v160 = vld [vmem:[#allocation7 + $0x28] sm:$0xff]
    %v161 = vld [vmem:[#allocation7 + $0x30] sm:$0xff]
    %v162 = vld [vmem:[#allocation7 + $0x38] sm:$0xff]
    %v163 = vld [vmem:[#allocation7 + $0x40] sm:$0xff]
    %v164 = vld [vmem:[#allocation7 + $0x48] sm:$0xff]
    %v165 = vld [vmem:[#allocation7 + $0x50] sm:$0xff]
    %v166 = vld [vmem:[#allocation7 + $0x58] sm:$0xff]
    %v167 = vld [vmem:[#allocation7 + $0x60] sm:$0xff]
    %v168 = vld [vmem:[#allocation7 + $0x68] sm:$0xff]
    %v169 = vld [vmem:[#allocation7 + $0x70] sm:$0xff]
    %v170 = vld [vmem:[#allocation7 + $0x78] sm:$0xff]
    %v171 = vld [vmem:[%s4] sm:$0x1]
    %v173 = vlaneseq
    %v174 = vshrl.u32 %v173, 7
    %v175 = vsub.s32 0, %v174
    %v176 = vrot.slane %v171, %v175
    %178 = vmatprep.subr.mxu0 0.0
    %179 = vmatpush1.msra.mxu0 %v155
    %180 = vmatprep.subr.mxu0 0.0
    %181 = vmatpush1.msra.mxu0 %v156
    %182 = vmatprep.subr.mxu0 0.0
    %183 = vmatpush1.msra.mxu0 %v157
    %184 = vmatprep.subr.mxu0 0.0
    %185 = vmatpush1.msra.mxu0 %v158
    %186 = vmatprep.subr.mxu0 0.0
    %187 = vmatpush1.msra.mxu0 %v159
    %188 = vmatprep.subr.mxu0 0.0
    %189 = vmatpush1.msra.mxu0 %v160
    %190 = vmatprep.subr.mxu0 0.0
    %191 = vmatpush1.msra.mxu0 %v161
    %192 = vmatprep.subr.mxu0 0.0
    %193 = vmatpush1.msra.mxu0 %v162
    %194 = vmatprep.subr.mxu0 0.0
    %195 = vmatpush1.msra.mxu0 %v163
    %196 = vmatprep.subr.mxu0 0.0
    %197 = vmatpush1.msra.mxu0 %v164
    %198 = vmatprep.subr.mxu0 0.0
    %199 = vmatpush1.msra.mxu0 %v165
    %200 = vmatprep.subr.mxu0 0.0
    %201 = vmatpush1.msra.mxu0 %v166
    %202 = vmatprep.subr.mxu0 0.0
    %203 = vmatpush1.msra.mxu0 %v167
    %204 = vmatprep.subr.mxu0 0.0
    %205 = vmatpush1.msra.mxu0 %v168
    %206 = vmatprep.subr.mxu0 0.0
    %207 = vmatpush1.msra.mxu0 %v169
    %208 = vmatprep.subr.mxu0 0.0
    %209 = vmatpush1.msra.mxu0 %v170
    %210 = vmatprep.subr.mxu0 0.0
    %211 = vmatpush1.msra.mxu0 0.0
    %212 = vmatprep.subr.mxu0 0.0
    %213 = vmatpush1.msra.mxu0 0.0
    %214 = vmatprep.subr.mxu0 0.0
    %215 = vmatpush1.msra.mxu0 0.0
    %216 = vmatprep.subr.mxu0 0.0
    %217 = vmatpush1.msra.mxu0 0.0
    %218 = vmatprep.subr.mxu0 0.0
    %219 = vmatpush1.msra.mxu0 0.0
    %220 = vmatprep.subr.mxu0 0.0
    %221 = vmatpush1.msra.mxu0 0.0
    %222 = vmatprep.subr.mxu0 0.0
    %223 = vmatpush1.msra.mxu0 0.0
    %224 = vmatprep.subr.mxu0 0.0
    %225 = vmatpush1.msra.mxu0 0.0
    %226 = vmatprep.subr.mxu0 0.0
    %227 = vmatpush1.msra.mxu0 0.0
    %228 = vmatprep.subr.mxu0 0.0
    %229 = vmatpush1.msra.mxu0 0.0
    %230 = vmatprep.subr.mxu0 0.0
    %231 = vmatpush1.msra.mxu0 0.0
    %232 = vmatprep.subr.mxu0 0.0
    %233 = vmatpush1.msra.mxu0 0.0
    %234 = vmatprep.subr.mxu0 0.0
    %235 = vmatpush1.msra.mxu0 0.0
    %236 = vmatprep.subr.mxu0 0.0
    %237 = vmatpush1.msra.mxu0 0.0
    %238 = vmatprep.subr.mxu0 0.0
    %239 = vmatpush1.msra.mxu0 0.0
    %240 = vmatprep.subr.mxu0 0.0
    %241 = vmatpush1.msra.mxu0 0.0
    %242 = vmatprep.mubr.f32.mxu0 0.0
    %243 = vmatmul.mubr.f32.gmra.mrb[0].mxu0 %v154
    %v244 = vpop.f32.mrb[0].mxu0
    %v245 = vadd.f32 %v176, %v244
    %v246 = vpop.f32.mrb[0].mxu0
    %247 = vdwg.mxu0
    %v248 = vmul.f32 %v245, 0.2
    %v249 = vmax.f32 %v245, %v248
    %v250 = vld [vmem:[%s5] sm:$0x1]
    %v252 = vlaneseq
    %v253 = vshrl.u32 %v252, 7
    %v254 = vsub.s32 0, %v253
    %v255 = vrot.slane %v250, %v254
    %v257 = vmul.f32 %v249, %v255
    %258 = vadd.xlane.f32.xlu0 %v257
    %v259 = vpop.xlane.xlu0 %258
    %v260 = vld [vmem:[#allocation2] sm:$0x1]
    %v262 = vlaneseq
    %v263 = vshrl.u32 %v262, 7
    %v264 = vsub.s32 0, %v263
    %v265 = vrot.slane %v260, %v264
    %v267 = vadd.f32 %v259, %v265
    %vm268 = vcmask 7168
    %269 = vst.msk [vmem:[%s7] sm:$0xff] %vm268, %v267
    // Predicated region
    $region42: #{tpu_custom_call.1} parent=1 // pred_check
      _
    $region43: #{tpu_custom_call.1} parent=1 // pred_check_branch
      %271 = sbr.rel (0) target = $region45
    $region44: #{tpu_custom_call.1} parent=1 // pred_region
      _
    $region45: #{tpu_custom_call.1} parent=1 // pred_fallthru
      _
    // Predicated region
    $region46: #{tpu_custom_call.1} parent=1 // pred_check
      _
    $region47: #{tpu_custom_call.1} parent=1 // pred_check_branch
      %273 = sbr.rel (0) target = $region49
    $region48: #{tpu_custom_call.1} parent=1 // pred_region
      _
    $region49: #{tpu_custom_call.1} parent=1 // pred_fallthru
      _
    %274 = vsyncpa [#allocation4], 1
    %275 = vsyncpa [#allocation6], 1

</llo_original>
